<compile_context>
chip_gen: v7x
topology: tpu7x:2x2x1
jax: 0.10.0
libtpu: 0.0.40
codegen_flags: <defaults>
</compile_context>

<pallas_src>
import functools
import math

import jax
import jax.numpy as jnp
from jax.experimental import pallas as pl
from jax.experimental.pallas import tpu as pltpu

_LANE = 128
_SUBLANE = 8
_TARGET_TILE_BYTES = 8 * 1024 * 1024      # ~8 MiB input tile per grid step
_MIN_SPLIT_TILE_BYTES = 2 * 1024 * 1024   # never shrink tiles below this just to split rows
_HEADROOM_BYTES = 4 * 1024 * 1024
_MAX_UNROLL = 128                         # max gc-blocks accumulated per grid step


def _round_up(x, m):
    return ((x + m - 1) // m) * m


def _vmem_limit_bytes():
    """64 MiB on 128-MiB-VMEM chips (v5e/v6e), 48 MiB on 64-MiB v7x."""
    cap = 64 * 1024 * 1024
    try:
        info = pltpu.get_tpu_info()
        cap = int(getattr(info, "vmem_capacity_bytes", cap) or cap)
    except Exception:
        pass
    return min(64 * 1024 * 1024, (3 * cap) // 4)


def _num_tensorcores():
    """Best-effort TensorCore count (v7x has 2); safe fallback of 1."""
    try:
        info = pltpu.get_tpu_info()
        for name in ("num_cores", "core_count", "num_tensorcores"):
            v = getattr(info, name, None)
            if isinstance(v, int) and v > 0:
                return v
    except Exception:
        pass
    return 1


def _choose_rows(n_rows, row_bytes, target):
    """Rows per grid step: fill ~target bytes; multiple of 8 unless covering all rows."""
    if n_rows <= _SUBLANE or n_rows * row_bytes <= target:
        return n_rows
    tr = (target // max(row_bytes, 1)) // _SUBLANE * _SUBLANE
    return max(_SUBLANE, min(tr, n_rows))


# ---------------------------------------------------------------------------
# Kernels
# ---------------------------------------------------------------------------

def _finish_and_store(acc, o_ref, *, gc, c, inv_v):
    # g-way in-lane finish: butterfly of pltpu.roll adds on the (idle) XLU
    # slot.  g = gc // c is a power of two; after the tree every lane j holds
    # the sum of its {j + m*c mod gc} coset, so lanes [0, c) hold the sum
    # over all of V.  When c is already a multiple of 128 (g == 1) the loop
    # body never runs.
    shift = gc // 2
    while shift >= c:
        acc = acc + pltpu.roll(acc, shift=shift, axis=1)
        shift //= 2
    o_ref[...] = (acc[:, 0:c] * inv_v).astype(o_ref.dtype)


def _folded_single_kernel(x_ref, o_ref, *, gc, c, kc, inv_v):
    # x_ref: (tr, kc*gc) lane-dense rows (kc*gc == V*C); o_ref: (tr, c).
    # Per-slice loads keep the f32 working set to ~one (tr, gc) accumulator.
    acc = x_ref[:, 0:gc].astype(jnp.float32)
    for j in range(1, kc):                              # unrolled, 128-aligned slices (VPU)
        acc = acc + x_ref[:, j * gc:(j + 1) * gc].astype(jnp.float32)
    _finish_and_store(acc, o_ref, gc=gc, c=c, inv_v=inv_v)


def _folded_multi_kernel(x_ref, o_ref, acc_ref, *, gc, c, kc, inv_v):
    # Long rows: the lane axis is additionally chunked by the second grid
    # axis ("arbitrary"); acc_ref is a (tr, gc) f32 VMEM accumulator.
    k = pl.program_id(1)

    @pl.when(k == 0)
    def _():
        acc_ref[...] = jnp.zeros_like(acc_ref)

    acc = acc_ref[...]
    for j in range(kc):
        acc = acc + x_ref[:, j * gc:(j + 1) * gc].astype(jnp.float32)
    acc_ref[...] = acc

    @pl.when(k == pl.num_programs(1) - 1)
    def _():
        _finish_and_store(acc, o_ref, gc=gc, c=c, inv_v=inv_v)


def _plain_mean_kernel(x_ref, o_ref, *, inv_v):
    # Fallback (V*C not a multiple of 128): x_ref (tr, V, C) -> o_ref (tr, C).
    x = x_ref[...].astype(jnp.float32)
    o_ref[...] = (jnp.sum(x, axis=1) * inv_v).astype(o_ref.dtype)


# ---------------------------------------------------------------------------
# Wrappers
# ---------------------------------------------------------------------------

def _mean_over_v_folded(x, N, V, C, itemsize, target, vmem_limit):
    """x: (N, V*C) with V*C % 128 == 0 -> (N, C) mean over V."""
    g = _LANE // math.gcd(C, _LANE)          # power of two
    gc = g * C                               # lcm(C, 128): lane-dense reduction block
    vc = V * C
    nblk = vc // gc

    row_bytes = vc * itemsize
    tr = _choose_rows(N, row_bytes, target)

    # Give a multi-TensorCore chip (v7x) >= 2 "parallel" row steps per core,
    # but never shrink tiles below ~2 MiB to do so (useless on 1-TC v5e/v6e).
    n_tc = _num_tensorcores()
    if n_tc > 1 and tr == N and N > _SUBLANE:
        want = 2 * n_tc
        tr_split = max(_SUBLANE, ((N // want) // _SUBLANE) * _SUBLANE)
        if 0 < tr_split < N and tr_split * row_bytes >= _MIN_SPLIT_TILE_BYTES:
            tr = tr_split

    budget = max(vmem_limit - _HEADROOM_BYTES, 4 * 1024 * 1024)
    out_row_bytes = _round_up(C, _LANE) * itemsize

    def fits(tr_, kc_):
        in_b = 2 * tr_ * kc_ * gc * itemsize   # double-buffered input tiles
        out_b = 2 * tr_ * out_row_bytes        # double-buffered output tiles
        acc_b = 3 * tr_ * gc * 4               # f32 accumulator + finish temporaries
        return in_b + out_b + acc_b <= budget

    # Lane chunk (in gc units) per grid step; shrink until it fits VMEM.
    kc_cap = max(1, min(nblk, target // max(tr * gc * itemsize, 1), _MAX_UNROLL))
    while kc_cap > 1 and not fits(tr, kc_cap):
        kc_cap //= 2
    while not fits(tr, kc_cap) and tr > _SUBLANE:
        tr = max(_SUBLANE, ((tr // 2) // _SUBLANE) * _SUBLANE)
    # Require kc | nblk so no block ever reads out-of-bounds lanes.
    kc = 1
    for d in range(kc_cap, 0, -1):
        if nblk % d == 0:
            kc = d
            break

    n_i = pl.cdiv(N, tr)
    n_k = nblk // kc
    inv_v = 1.0 / V

    cost = pl.CostEstimate(
        flops=N * V * C,
        transcendentals=0,
        bytes_accessed=N * vc * itemsize + N * C * itemsize,
    )
    cparams = pltpu.CompilerParams(
        dimension_semantics=("parallel",) if n_k == 1 else ("parallel", "arbitrary"),
        vmem_limit_bytes=vmem_limit,
    )
    out_shape = jax.ShapeDtypeStruct((N, C), x.dtype)

    if n_k == 1:
        return pl.pallas_call(
            functools.partial(_folded_single_kernel, gc=gc, c=C, kc=kc, inv_v=inv_v),
            out_shape=out_shape,
            grid_spec=pltpu.PrefetchScalarGridSpec(
                num_scalar_prefetch=0,
                grid=(n_i,),
                in_specs=[pl.BlockSpec((tr, vc), lambda i: (i, 0))],
                out_specs=pl.BlockSpec((tr, C), lambda i: (i, 0)),
            ),
            compiler_params=cparams,
            cost_estimate=cost,
        )(x)

    return pl.pallas_call(
        functools.partial(_folded_multi_kernel, gc=gc, c=C, kc=kc, inv_v=inv_v),
        out_shape=out_shape,
        grid_spec=pltpu.PrefetchScalarGridSpec(
            num_scalar_prefetch=0,
            grid=(n_i, n_k),
            in_specs=[pl.BlockSpec((tr, kc * gc), lambda i, k: (i, k))],
            out_specs=pl.BlockSpec((tr, C), lambda i, k: (i, 0)),
            scratch_shapes=[pltpu.VMEM((tr, gc), jnp.float32)],
        ),
        compiler_params=cparams,
        cost_estimate=cost,
    )(x)


def _mean_over_v_plain(x, N, V, C, itemsize, target, vmem_limit):
    """x: (N, V, C) -> (N, C); used when V*C is not a multiple of 128."""
    pad_row = _round_up(V, _SUBLANE) * _round_up(C, _LANE) * itemsize
    budget = max(vmem_limit - _HEADROOM_BYTES, 4 * 1024 * 1024)

    def fits(tr_):
        in_b = 2 * tr_ * pad_row
        f32_b = tr_ * _round_up(V, _SUBLANE) * _round_up(C, _LANE) * 4
        out_b = 2 * tr_ * _round_up(C, _LANE) * itemsize
        return in_b + f32_b + out_b <= budget

    tr = _choose_rows(N, pad_row, target)
    while not fits(tr) and tr > _SUBLANE:
        tr = max(_SUBLANE, ((tr // 2) // _SUBLANE) * _SUBLANE)
    if not fits(tr):
        # Pathological unfoldable shape (huge V*C with an awkward C): keep it
        # correct with a plain XLA mean rather than risking a VMEM OOM.
        return jnp.mean(x.astype(jnp.float32), axis=1).astype(x.dtype)

    cost = pl.CostEstimate(
        flops=N * V * C,
        transcendentals=0,
        bytes_accessed=N * V * C * itemsize + N * C * itemsize,
    )

    return pl.pallas_call(
        functools.partial(_plain_mean_kernel, inv_v=1.0 / V),
        out_shape=jax.ShapeDtypeStruct((N, C), x.dtype),
        grid_spec=pltpu.PrefetchScalarGridSpec(
            num_scalar_prefetch=0,
            grid=(pl.cdiv(N, tr),),
            in_specs=[pl.BlockSpec((tr, V, C), lambda i: (i, 0, 0))],
            out_specs=pl.BlockSpec((tr, C), lambda i: (i, 0)),
        ),
        compiler_params=pltpu.CompilerParams(
            dimension_semantics=("parallel",),
            vmem_limit_bytes=vmem_limit,
        ),
        cost_estimate=cost,
    )(x)


def max_gather(h, *, target_tile_bytes=None):
    """MaxGather.forward: h [B, L, V, C] -> [B, L, C] (mean over the V axis)."""
    B, L, V, C = h.shape
    N = B * L
    itemsize = jnp.dtype(h.dtype).itemsize
    target = int(target_tile_bytes or _TARGET_TILE_BYTES)
    vmem_limit = _vmem_limit_bytes()

    if (V * C) % _LANE == 0:
        out = _mean_over_v_folded(h.reshape(N, V * C), N, V, C, itemsize, target, vmem_limit)
    else:
        out = _mean_over_v_plain(h.reshape(N, V, C), N, V, C, itemsize, target, vmem_limit)
    return out.reshape(B, L, C)


def max_gather_ref(h):
    # Pure-JAX reference of the PyTorch forward.
    B, L, V, C = h.shape
    x = h.reshape(B * L, V, C)
    x = jnp.mean(jnp.swapaxes(x, 1, 2), axis=-1)   # AdaptiveAvgPool1d(1) + squeeze
    return x.reshape(B, L, C)


if __name__ == "__main__":
    key = jax.random.PRNGKey(0)
    k1, k2, k3, k4, k5 = jax.random.split(key, 5)

    def check(name, h, ref_atol=1e-5, **kw):
        out = jax.block_until_ready(max_gather(h, **kw))
        ref = max_gather_ref(h)
        assert out.shape == ref.shape, (name, out.shape, ref.shape)
        ok = jnp.allclose(out.astype(jnp.float32), ref.astype(jnp.float32),
                          atol=ref_atol, rtol=1e-4)
        assert ok, f"mismatch vs reference: {name}"

    # Lane-dense folded path, g = 4 (C = 32), single lane chunk.
    check("folded_c32", jax.random.normal(k1, (2, 8, 16, 32), dtype=jnp.float32))
    # Folded path with gc = 384 (C = 48, g = 8): cross-vreg roll finish.
    check("folded_c48", jax.random.normal(k2, (2, 4, 8, 48), dtype=jnp.float32))
    # Chunked reduction axis (tiny tile target forces the 2-D grid + accumulator).
    check("folded_multi_k", jax.random.normal(k3, (2, 4, 24, 64), dtype=jnp.float32),
          target_tile_bytes=20 * 1024)
    # Fallback path: V*C = 120 is not a multiple of 128.
    check("plain_c20", jax.random.normal(k4, (2, 4, 6, 20), dtype=jnp.float32))
    # bf16 input on the folded path (f32 accumulation in-kernel).
    check("folded_bf16", jax.random.normal(k5, (2, 8, 16, 32), dtype=jnp.bfloat16),
          ref_atol=3e-2)

    print("KERNEL_OK")
</pallas_src>

<mosaic_0001>
module attributes {stable_mosaic.version = 11 : i64} {
  func.func @_folded_single_kernel(%arg0: i32, %arg1: memref<16x512xf32, #tpu.memory_space<vmem>>, %arg2: memref<16x32xf32, #tpu.memory_space<vmem>>) attributes {dimension_semantics = [#tpu.dimension_semantics<parallel>], iteration_bounds = array<i64: 1>, scalar_prefetch = 0 : i64, scratch_operands = 0 : i64, tpu.core_type = #tpu.core_type<tc>, window_params = [{transform_indices = @transform_0, window_bounds = array<i64: 16, 512>}, {transform_indices = @transform_1, window_bounds = array<i64: 16, 32>}]} {
    %c0 = arith.constant 0 : index
    %c0_0 = arith.constant 0 : index
    %0 = vector.load %arg1[%c0, %c0_0] : memref<16x512xf32, #tpu.memory_space<vmem>>, vector<16x128xf32>
    %c0_1 = arith.constant 0 : index
    %c128 = arith.constant 128 : index
    %1 = vector.load %arg1[%c0_1, %c128] : memref<16x512xf32, #tpu.memory_space<vmem>>, vector<16x128xf32>
    %2 = arith.addf %0, %1 : vector<16x128xf32>
    %c0_2 = arith.constant 0 : index
    %c256 = arith.constant 256 : index
    %3 = vector.load %arg1[%c0_2, %c256] : memref<16x512xf32, #tpu.memory_space<vmem>>, vector<16x128xf32>
    %4 = arith.addf %2, %3 : vector<16x128xf32>
    %c0_3 = arith.constant 0 : index
    %c384 = arith.constant 384 : index
    %5 = vector.load %arg1[%c0_3, %c384] : memref<16x512xf32, #tpu.memory_space<vmem>>, vector<16x128xf32>
    %6 = arith.addf %4, %5 : vector<16x128xf32>
    %c64_i32 = arith.constant 64 : i32
    %7 = tpu.dynamic_rotate %6 by %c64_i32 dim 1 : vector<16x128xf32>, i32 -> vector<16x128xf32>
    %8 = arith.addf %6, %7 : vector<16x128xf32>
    %c32_i32 = arith.constant 32 : i32
    %9 = tpu.dynamic_rotate %8 by %c32_i32 dim 1 : vector<16x128xf32>, i32 -> vector<16x128xf32>
    %10 = arith.addf %8, %9 : vector<16x128xf32>
    %11 = vector.extract_strided_slice %10 {offsets = [0, 0], sizes = [16, 32], strides = [1, 1]} : vector<16x128xf32> to vector<16x32xf32>
    %cst = arith.constant 6.250000e-02 : f32
    %12 = vector.broadcast %cst : f32 to vector<16x32xf32>
    %13 = arith.mulf %11, %12 : vector<16x32xf32>
    %c0_4 = arith.constant 0 : index
    %c0_5 = arith.constant 0 : index
    %14 = vector.load %arg2[%c0_4, %c0_5] : memref<16x32xf32, #tpu.memory_space<vmem>>, vector<16x32xf32>
    tpu.vector_store %arg2[%c0_4, %c0_5], %13 {strides = array<i32>} : memref<16x32xf32, #tpu.memory_space<vmem>>, vector<16x32xf32>,
    return
  }
  func.func @transform_0(%arg0: i32) -> (i32, i32) {
    %c0_i32 = arith.constant 0 : i32
    %c0_i32_0 = arith.constant 0 : i32
    return %arg0, %c0_i32 : i32, i32
  }
  func.func @transform_1(%arg0: i32) -> (i32, i32) {
    %c0_i32 = arith.constant 0 : i32
    %c0_i32_0 = arith.constant 0 : i32
    return %arg0, %c0_i32 : i32, i32
  }
}

</mosaic_0001>

<llo_original>
// kernel: tpu_custom_call.1
$region0: #{tpu_custom_call.1}
  #allocation0 [shape = 'u32[]', space=smem, size = 0x4, offset = 0x4, fixed_abs, tag = 'smem constant byte address 0x4 - core index']
  #allocation1 [shape = 'u32[144,128]{1,0:T(1,128)}', space=vmem, size = 0x12000, scoped, tag = 'internal scratch']
  %s0 = inlined_call_operand.hbm [shape: f32[16,512], index: 0, kind: input, shape index: {}]
  %s1 = inlined_call_operand.hbm [shape: f32[16,32], index: 1, kind: output, shape index: {}]
  %s2 = sld [smem:[#allocation0]]
  $region18: #{tpu_custom_call.1} parent=0
    _
  %s4 = ssub.s32 1, %s2
  %s5 = scalar_select 0, %s4, %s2
  $region1: #{tpu_custom_call.1} parent=0
    #allocation2 [shape = 'u8[32768]{0}', space=vmem, size = 0x8000, scoped, tag = 'input window, operand 0, single buffered']
    #allocation3 [shape = 's32[1]{0}', space=sflag, size = 0x4, scoped, tag = 'scoped memory for tpu_custom_call.1']
    #allocation4 [shape = 's32[1]{0}', space=sflag, size = 0x4, scoped, tag = 'scoped memory for tpu_custom_call.1']
    #allocation5 [shape = 'u8[8192]{0}', space=vmem, size = 0x2000, scoped, tag = 'output window, operand 0, single buffered']
    %6 = vsyncpa [#allocation3], 0
    %7 = vsyncpa [#allocation4], 0
    // Predicated region
    $region2: #{tpu_custom_call.1} parent=1 // pred_check
      _
    $region3: #{tpu_custom_call.1} parent=1 // pred_check_branch
      %9 = sbr.rel (0) target = $region5
    $region4: #{tpu_custom_call.1} parent=1 // pred_region
      %s11 = ssub.s32 1024, 1024
      %12 = vsyncadd [#allocation3], %s11
      %s13 = sshll.u32 [#allocation2], 4
      %s14 = int_to_ptr.vmem [resolvable:$true] %s13
      %19 = dma.hbm_to_vmem [thread:$0]  %s0, 1024, %s14, [#allocation3], 512, 512, 32
    $region5: #{tpu_custom_call.1} parent=1 // pred_fallthru
      _
    // Predicated region
    $region6: #{tpu_custom_call.1} parent=1 // pred_check
      _
    $region7: #{tpu_custom_call.1} parent=1 // pred_check_branch
      %21 = sbr.rel (0) target = $region9
    $region8: #{tpu_custom_call.1} parent=1 // pred_region
      %22 = dma.done [#allocation3], 1024
    $region9: #{tpu_custom_call.1} parent=1 // pred_fallthru
      _
    %v23 = vld [vmem:[#allocation2] sm:$0xff]
    %v24 = vld [vmem:[#allocation2 + $0x20] sm:$0xff]
    %v25 = vld [vmem:[#allocation2 + $0x8] sm:$0xff]
    %v26 = vld [vmem:[#allocation2 + $0x28] sm:$0xff]
    %v27 = vadd.f32 %v23, %v25
    %v28 = vadd.f32 %v24, %v26
    %v29 = vld [vmem:[#allocation2 + $0x10] sm:$0xff]
    %v30 = vld [vmem:[#allocation2 + $0x30] sm:$0xff]
    %v31 = vadd.f32 %v27, %v29
    %v32 = vadd.f32 %v28, %v30
    %v33 = vld [vmem:[#allocation2 + $0x18] sm:$0xff]
    %v34 = vld [vmem:[#allocation2 + $0x38] sm:$0xff]
    %v35 = vadd.f32 %v31, %v33
    %v36 = vadd.f32 %v32, %v34
    %37 = vrot.lane.b32.xlu0 %v35, 64
    %v38 = vpop.permute.xlu0 %37
    %39 = vrot.lane.b32.xlu0 %v36, 64
    %v40 = vpop.permute.xlu0 %39
    %v41 = vadd.f32 %v35, %v38
    %v42 = vadd.f32 %v36, %v40
    %43 = vrot.lane.b32.xlu0 %v41, 32
    %v44 = vpop.permute.xlu0 %43
    %45 = vrot.lane.b32.xlu0 %v42, 32
    %v46 = vpop.permute.xlu0 %45
    %v47 = vadd.f32 %v41, %v44
    %v48 = vadd.f32 %v42, %v46
    %v49 = vmul.f32 %v47, 0.0625
    %v50 = vmul.f32 %v48, 0.0625
    %vm51 = vcmask 261120
    %52 = vst.msk [vmem:[#allocation5] sm:$0xff] %vm51, %v49
    %53 = vst.msk [vmem:[#allocation5 + $0x8] sm:$0xff] %vm51, %v50
    // Predicated region
    $region10: #{tpu_custom_call.1} parent=1 // pred_check
      _
    $region11: #{tpu_custom_call.1} parent=1 // pred_check_branch
      %55 = sbr.rel (0) target = $region13
    $region12: #{tpu_custom_call.1} parent=1 // pred_region
      %s57 = ssub.s32 256, 256
      %58 = vsyncadd [#allocation4], %s57
      %s59 = sshll.u32 [#allocation5], 4
      %s60 = int_to_ptr.vmem [resolvable:$true] %s59
      %65 = dma.vmem_to_hbm [thread:$0]  %s60, 256, %s1, [#allocation4], 128, 128, 8
    $region13: #{tpu_custom_call.1} parent=1 // pred_fallthru
      _
    // Predicated region
    $region14: #{tpu_custom_call.1} parent=1 // pred_check
      _
    $region15: #{tpu_custom_call.1} parent=1 // pred_check_branch
      %67 = sbr.rel (0) target = $region17
    $region16: #{tpu_custom_call.1} parent=1 // pred_region
      %68 = dma.done [#allocation4], 256
    $region17: #{tpu_custom_call.1} parent=1 // pred_fallthru
      _
    %69 = vsyncpa [#allocation3], 1
    %70 = vsyncpa [#allocation4], 1

</llo_original>
